<compile_context>
chip_gen: v6e
topology: v6e:2x2x1
jax: 0.10.0
libtpu: 0.0.40
codegen_flags: <defaults>
</compile_context>

<pallas_src>
import numpy as np

import jax
import jax.numpy as jnp
from jax.experimental import pallas as pl
from jax.experimental.pallas import tpu as pltpu


def wavenet_resblock_kernel(x_ref, wdil_ref, ws_ref, wp_ref, pool_ref,
                            o_ref, skip_ref, y_ref):
    c_in = x_ref.shape[1] // 2          # rows [0:c_in] = x_cur, [c_in:] = x_prev
    c_dil = wdil_ref.shape[0] // 2      # rows [0:c_dil] = filter, [c_dil:] = gate

    x = x_ref[0]                                                   # (2*C_in, Bb*T)

    # One fused MXU call: both taps of both dilated convs.
    pre = jnp.dot(wdil_ref[...], x,
                  preferred_element_type=jnp.float32)              # (2*C_dil, Bb*T) f32
    # gated activation (f32 element-wise / EUP)
    o_act = jnp.tanh(pre[:c_dil]) * jax.nn.sigmoid(pre[c_dil:])    # (C_dil, Bb*T) f32
    o_lo = o_act.astype(ws_ref.dtype)                              # matmul dtype

    # 1x1 skip conv + residual add (requires in_channels == out_channels)
    skip = jnp.dot(ws_ref[...], o_lo,
                   preferred_element_type=jnp.float32)             # (C_out, Bb*T) f32
    residual = x[:c_in].astype(jnp.float32)                        # x_cur (zero-offset slice)
    skip_ref[0] = skip.astype(skip_ref.dtype)
    o_ref[0] = (skip + residual).astype(o_ref.dtype)

    # AvgPool1d(160, 80) as one matmul against a static averaging matrix,
    # then the 1x1 prediction conv (both on the MXU).
    y_pool = jnp.dot(o_lo, pool_ref[...],
                     preferred_element_type=jnp.float32)           # (C_dil, Bb*n_win) f32
    y = jnp.dot(wp_ref[...], y_pool.astype(wp_ref.dtype),
                preferred_element_type=jnp.float32)                # (C_pred, Bb*n_win)
    y_ref[0] = y.astype(y_ref.dtype)


def wavenet_resblock(x, w_filter, w_gate, w_skip, w_pred, *, dilation,
                     batch_block=None, matmul_dtype=None):
    """x: (B, C_in, T); conv weights in PyTorch (C_out, C_in, K) layout.

    Returns (o, skip, y) matching WavenetResBlock.forward.
    """
    B, c_in, T = x.shape
    c_dil = w_filter.shape[0]
    c_out = w_skip.shape[0]
    c_pred = w_pred.shape[0]
    assert c_out == c_in, "residual add requires in_channels == out_channels"

    pool_size, pool_stride = 160, 80
    n_win = (T - pool_size) // pool_stride + 1
    assert n_win >= 1, "AvgPool1d(160, 80) needs T >= 160"

    out_dtype = x.dtype
    if matmul_dtype is None:
        matmul_dtype = x.dtype

    # Fold `batch_block` batch elements into one grid step (lane axis becomes
    # Bb*T) while keeping >= 2 grid steps so v7x's two TensorCores are used.
    if batch_block is None:
        batch_block = max(1, B // 2)
    while B % batch_block:
        batch_block -= 1
    Bb = batch_block
    nb = B // Bb

    # ---- XLA-side glue (done once; keeps the kernel lane-aligned) ----
    # kernel_size=2 dilated conv taps: tap1 = x (current), tap0 = x shifted
    # right by `dilation` (== torch F.pad(x, (dilation, 0)) then no-pad conv).
    x_prev = jnp.pad(x, ((0, 0), (0, 0), (dilation, 0)))[:, :, :T]
    x_taps = jnp.concatenate([x, x_prev], axis=1)                  # (B, 2*C_in, T)
    x_taps = (x_taps.reshape(nb, Bb, 2 * c_in, T)
              .transpose(0, 2, 1, 3)
              .reshape(nb, 2 * c_in, Bb * T)
              .astype(matmul_dtype))

    # Fused filter+gate weights, ordered to match the [x_cur ; x_prev] stack.
    wf1, wf0 = w_filter[:, :, 1], w_filter[:, :, 0]
    wg1, wg0 = w_gate[:, :, 1], w_gate[:, :, 0]
    w_dil = jnp.concatenate(
        [jnp.concatenate([wf1, wf0], axis=1),
         jnp.concatenate([wg1, wg0], axis=1)], axis=0).astype(matmul_dtype)
    ws2 = w_skip[:, :, 0].astype(matmul_dtype)                     # (C_out, C_dil)
    wp2 = w_pred[:, :, 0].astype(matmul_dtype)                     # (C_pred, C_dil)

    # Static (block-diagonal) averaging matrix: AvgPool1d(160, 80) == o @ P.
    P = np.zeros((Bb * T, Bb * n_win), np.float32)
    for b in range(Bb):
        for j in range(n_win):
            r0 = b * T + j * pool_stride
            P[r0:r0 + pool_size, b * n_win + j] = 1.0 / pool_size
    pool_mat = jnp.asarray(P, dtype=matmul_dtype)

    def rep(shape):  # whole-array block, replicated across the grid
        return pl.BlockSpec(shape, lambda b: (0,) * len(shape))

    out_shape = (
        jax.ShapeDtypeStruct((nb, c_out, Bb * T), out_dtype),       # o (residual added)
        jax.ShapeDtypeStruct((nb, c_out, Bb * T), out_dtype),       # skip
        jax.ShapeDtypeStruct((nb, c_pred, Bb * n_win), out_dtype),  # y (pooled pred)
    )

    o_flat, skip_flat, y_flat = pl.pallas_call(
        wavenet_resblock_kernel,
        out_shape=out_shape,
        grid=(nb,),
        in_specs=[
            pl.BlockSpec((1, 2 * c_in, Bb * T), lambda b: (b, 0, 0)),
            rep((2 * c_dil, 2 * c_in)),
            rep((c_out, c_dil)),
            rep((c_pred, c_dil)),
            rep((Bb * T, Bb * n_win)),
        ],
        out_specs=(
            pl.BlockSpec((1, c_out, Bb * T), lambda b: (b, 0, 0)),
            pl.BlockSpec((1, c_out, Bb * T), lambda b: (b, 0, 0)),
            pl.BlockSpec((1, c_pred, Bb * n_win), lambda b: (b, 0, 0)),
        ),
        compiler_params=pltpu.CompilerParams(
            dimension_semantics=("parallel",)),
    )(x_taps, w_dil, ws2, wp2, pool_mat)

    # Unfold the lane-packed batch back to PyTorch NCW layout.
    def unfold(a, c, L):
        return (a.reshape(nb, c, Bb, L).transpose(0, 2, 1, 3).reshape(B, c, L))

    return (unfold(o_flat, c_out, T),
            unfold(skip_flat, c_out, T),
            unfold(y_flat, c_pred, n_win))


if __name__ == "__main__":
    # Small-but-consistent shapes: AvgPool1d(160, 80) needs T >= 160.
    B, C_IN, C_OUT, C_DIL, C_PRED = 2, 4, 4, 16, 64
    T = 320
    DILATION = 2

    key = jax.random.PRNGKey(0)
    k_x, k_f, k_g, k_s, k_p = jax.random.split(key, 5)
    x = jax.random.normal(k_x, (B, C_IN, T), jnp.float32)
    w_filter = jax.random.normal(k_f, (C_DIL, C_IN, 2), jnp.float32) * 0.3
    w_gate = jax.random.normal(k_g, (C_DIL, C_IN, 2), jnp.float32) * 0.3
    w_skip = jax.random.normal(k_s, (C_OUT, C_DIL, 1), jnp.float32) * 0.3
    w_pred = jax.random.normal(k_p, (C_PRED, C_DIL, 1), jnp.float32) * 0.3

    # ---- plain-JAX reference ----
    xp = jnp.pad(x, ((0, 0), (0, 0), (DILATION, 0)))
    x_prev, x_cur = xp[:, :, :T], x
    pre_f = (jnp.einsum('oi,bit->bot', w_filter[:, :, 0], x_prev)
             + jnp.einsum('oi,bit->bot', w_filter[:, :, 1], x_cur))
    pre_g = (jnp.einsum('oi,bit->bot', w_gate[:, :, 0], x_prev)
             + jnp.einsum('oi,bit->bot', w_gate[:, :, 1], x_cur))
    o_act = jnp.tanh(pre_f) * jax.nn.sigmoid(pre_g)
    skip_ref = jnp.einsum('oi,bit->bot', w_skip[:, :, 0], o_act)
    o_ref = skip_ref + x
    n_win = (T - 160) // 80 + 1
    y_pool = jnp.stack(
        [o_act[:, :, j * 80:j * 80 + 160].mean(-1) for j in range(n_win)],
        axis=-1)
    y_ref = jnp.einsum('oi,bit->bot', w_pred[:, :, 0], y_pool)

    def check(outs, atol):
        o, skip, y = outs
        assert o.shape == (B, C_OUT, T) and skip.shape == (B, C_OUT, T)
        assert y.shape == (B, C_PRED, n_win)
        assert jnp.allclose(o, o_ref, atol=atol), float(jnp.max(jnp.abs(o - o_ref)))
        assert jnp.allclose(skip, skip_ref, atol=atol), \
            float(jnp.max(jnp.abs(skip - skip_ref)))
        assert jnp.allclose(y, y_ref, atol=atol), float(jnp.max(jnp.abs(y - y_ref)))

    # default: 1 batch element per grid step -> 2 parallel steps (v7x megacore)
    check(jax.block_until_ready(
        wavenet_resblock(x, w_filter, w_gate, w_skip, w_pred,
                         dilation=DILATION)), 1e-4)

    # whole batch folded into one grid step (lane axis = B*T)
    check(jax.block_until_ready(
        wavenet_resblock(x, w_filter, w_gate, w_skip, w_pred,
                         dilation=DILATION, batch_block=B)), 1e-4)

    # bf16 MXU operands (v6e/v7x path), f32 accumulation + f32 element-wise
    check(jax.block_until_ready(
        wavenet_resblock(x, w_filter, w_gate, w_skip, w_pred,
                         dilation=DILATION, matmul_dtype=jnp.bfloat16)), 5e-2)

    print("KERNEL_OK")
</pallas_src>

<mosaic_0001>
module attributes {stable_mosaic.version = 11 : i64} {
  func.func @wavenet_resblock_kernel(%arg0: i32, %arg1: memref<1x8x320xf32, #tpu.memory_space<vmem>>, %arg2: memref<32x8xf32, #tpu.memory_space<vmem>>, %arg3: memref<4x16xf32, #tpu.memory_space<vmem>>, %arg4: memref<64x16xf32, #tpu.memory_space<vmem>>, %arg5: memref<320x3xf32, #tpu.memory_space<vmem>>, %arg6: memref<1x4x320xf32, #tpu.memory_space<vmem>>, %arg7: memref<1x4x320xf32, #tpu.memory_space<vmem>>, %arg8: memref<1x64x3xf32, #tpu.memory_space<vmem>>) attributes {dimension_semantics = [#tpu.dimension_semantics<parallel>], iteration_bounds = array<i64: 2>, scalar_prefetch = 0 : i64, scratch_operands = 0 : i64, tpu.core_type = #tpu.core_type<tc>, window_params = [{transform_indices = @transform_0, window_bounds = array<i64: 1, 8, 320>}, {pipeline_mode = #tpu.pipeline_mode<synchronous>, transform_indices = @transform_1, window_bounds = array<i64: 32, 8>}, {pipeline_mode = #tpu.pipeline_mode<synchronous>, transform_indices = @transform_2, window_bounds = array<i64: 4, 16>}, {pipeline_mode = #tpu.pipeline_mode<synchronous>, transform_indices = @transform_3, window_bounds = array<i64: 64, 16>}, {pipeline_mode = #tpu.pipeline_mode<synchronous>, transform_indices = @transform_4, window_bounds = array<i64: 320, 3>}, {transform_indices = @transform_5, window_bounds = array<i64: 1, 4, 320>}, {transform_indices = @transform_6, window_bounds = array<i64: 1, 4, 320>}, {transform_indices = @transform_7, window_bounds = array<i64: 1, 64, 3>}]} {
    %c0 = arith.constant 0 : index
    %c0_0 = arith.constant 0 : index
    %c0_1 = arith.constant 0 : index
    %0 = vector.load %arg1[%c0, %c0_0, %c0_1] : memref<1x8x320xf32, #tpu.memory_space<vmem>>, vector<1x8x320xf32>
    %1 = vector.shape_cast %0 : vector<1x8x320xf32> to vector<8x320xf32>
    %c0_2 = arith.constant 0 : index
    %c0_3 = arith.constant 0 : index
    %2 = vector.load %arg2[%c0_2, %c0_3] : memref<32x8xf32, #tpu.memory_space<vmem>>, vector<32x8xf32>
    %cst = arith.constant dense<0.000000e+00> : vector<32x320xf32>
    %3 = tpu.matmul %2, %1, %cst {dimension_numbers = #tpu.dot_dimension_numbers<[1], [0], [0], [1], [0, 0, 1, 1], [], []>} : vector<32x8xf32>, vector<8x320xf32>, vector<32x320xf32> -> vector<32x320xf32>
    %4 = vector.extract_strided_slice %3 {offsets = [0, 0], sizes = [16, 320], strides = [1, 1]} : vector<32x320xf32> to vector<16x320xf32>
    %5 = math.tanh %4 : vector<16x320xf32>
    %6 = vector.extract_strided_slice %3 {offsets = [16, 0], sizes = [16, 320], strides = [1, 1]} : vector<32x320xf32> to vector<16x320xf32>
    %7 = arith.negf %6 : vector<16x320xf32>
    %8 = math.exp %7 : vector<16x320xf32>
    %cst_4 = arith.constant 1.000000e+00 : f32
    %9 = vector.broadcast %cst_4 : f32 to vector<16x320xf32>
    %10 = arith.addf %9, %8 : vector<16x320xf32>
    %11 = arith.divf %9, %10 : vector<16x320xf32>
    %12 = arith.mulf %5, %11 : vector<16x320xf32>
    %c0_5 = arith.constant 0 : index
    %c0_6 = arith.constant 0 : index
    %13 = vector.load %arg3[%c0_5, %c0_6] : memref<4x16xf32, #tpu.memory_space<vmem>>, vector<4x16xf32>
    %cst_7 = arith.constant dense<0.000000e+00> : vector<4x320xf32>
    %14 = tpu.matmul %13, %12, %cst_7 {dimension_numbers = #tpu.dot_dimension_numbers<[1], [0], [0], [1], [0, 0, 1, 1], [], []>} : vector<4x16xf32>, vector<16x320xf32>, vector<4x320xf32> -> vector<4x320xf32>
    %15 = vector.extract_strided_slice %1 {offsets = [0, 0], sizes = [4, 320], strides = [1, 1]} : vector<8x320xf32> to vector<4x320xf32>
    %c0_8 = arith.constant 0 : index
    %c0_9 = arith.constant 0 : index
    %c0_10 = arith.constant 0 : index
    %16 = vector.load %arg7[%c0_8, %c0_9, %c0_10] : memref<1x4x320xf32, #tpu.memory_space<vmem>>, vector<1x4x320xf32>
    %17 = vector.shape_cast %16 : vector<1x4x320xf32> to vector<4x320xf32>
    %18 = vector.shape_cast %14 : vector<4x320xf32> to vector<1x4x320xf32>
    tpu.vector_store %arg7[%c0_8, %c0_9, %c0_10], %18 {strides = array<i32>} : memref<1x4x320xf32, #tpu.memory_space<vmem>>, vector<1x4x320xf32>,
    %19 = arith.addf %14, %15 : vector<4x320xf32>
    %c0_11 = arith.constant 0 : index
    %c0_12 = arith.constant 0 : index
    %c0_13 = arith.constant 0 : index
    %20 = vector.load %arg6[%c0_11, %c0_12, %c0_13] : memref<1x4x320xf32, #tpu.memory_space<vmem>>, vector<1x4x320xf32>
    %21 = vector.shape_cast %20 : vector<1x4x320xf32> to vector<4x320xf32>
    %22 = vector.shape_cast %19 : vector<4x320xf32> to vector<1x4x320xf32>
    tpu.vector_store %arg6[%c0_11, %c0_12, %c0_13], %22 {strides = array<i32>} : memref<1x4x320xf32, #tpu.memory_space<vmem>>, vector<1x4x320xf32>,
    %c0_14 = arith.constant 0 : index
    %c0_15 = arith.constant 0 : index
    %23 = vector.load %arg5[%c0_14, %c0_15] : memref<320x3xf32, #tpu.memory_space<vmem>>, vector<320x3xf32>
    %cst_16 = arith.constant dense<0.000000e+00> : vector<16x3xf32>
    %24 = tpu.matmul %12, %23, %cst_16 {dimension_numbers = #tpu.dot_dimension_numbers<[1], [0], [0], [1], [0, 0, 1, 1], [], []>} : vector<16x320xf32>, vector<320x3xf32>, vector<16x3xf32> -> vector<16x3xf32>
    %c0_17 = arith.constant 0 : index
    %c0_18 = arith.constant 0 : index
    %25 = vector.load %arg4[%c0_17, %c0_18] : memref<64x16xf32, #tpu.memory_space<vmem>>, vector<64x16xf32>
    %cst_19 = arith.constant dense<0.000000e+00> : vector<64x3xf32>
    %26 = tpu.matmul %25, %24, %cst_19 {dimension_numbers = #tpu.dot_dimension_numbers<[1], [0], [0], [1], [0, 0, 1, 1], [], []>} : vector<64x16xf32>, vector<16x3xf32>, vector<64x3xf32> -> vector<64x3xf32>
    %c0_20 = arith.constant 0 : index
    %c0_21 = arith.constant 0 : index
    %c0_22 = arith.constant 0 : index
    %27 = vector.load %arg8[%c0_20, %c0_21, %c0_22] : memref<1x64x3xf32, #tpu.memory_space<vmem>>, vector<1x64x3xf32>
    %28 = vector.shape_cast %27 : vector<1x64x3xf32> to vector<64x3xf32>
    %29 = vector.shape_cast %26 : vector<64x3xf32> to vector<1x64x3xf32>
    tpu.vector_store %arg8[%c0_20, %c0_21, %c0_22], %29 {strides = array<i32>} : memref<1x64x3xf32, #tpu.memory_space<vmem>>, vector<1x64x3xf32>,
    return
  }
  func.func @transform_0(%arg0: i32) -> (i32, i32, i32) {
    %c0_i32 = arith.constant 0 : i32
    %c0_i32_0 = arith.constant 0 : i32
    %c0_i32_1 = arith.constant 0 : i32
    return %arg0, %c0_i32, %c0_i32_0 : i32, i32, i32
  }
  func.func @transform_1(%arg0: i32) -> (i32, i32) {
    %c0_i32 = arith.constant 0 : i32
    %c0_i32_0 = arith.constant 0 : i32
    %c0_i32_1 = arith.constant 0 : i32
    return %c0_i32, %c0_i32_0 : i32, i32
  }
  func.func @transform_2(%arg0: i32) -> (i32, i32) {
    %c0_i32 = arith.constant 0 : i32
    %c0_i32_0 = arith.constant 0 : i32
    %c0_i32_1 = arith.constant 0 : i32
    return %c0_i32, %c0_i32_0 : i32, i32
  }
  func.func @transform_3(%arg0: i32) -> (i32, i32) {
    %c0_i32 = arith.constant 0 : i32
    %c0_i32_0 = arith.constant 0 : i32
    %c0_i32_1 = arith.constant 0 : i32
    return %c0_i32, %c0_i32_0 : i32, i32
  }
  func.func @transform_4(%arg0: i32) -> (i32, i32) {
    %c0_i32 = arith.constant 0 : i32
    %c0_i32_0 = arith.constant 0 : i32
    %c0_i32_1 = arith.constant 0 : i32
    return %c0_i32, %c0_i32_0 : i32, i32
  }
  func.func @transform_5(%arg0: i32) -> (i32, i32, i32) {
    %c0_i32 = arith.constant 0 : i32
    %c0_i32_0 = arith.constant 0 : i32
    %c0_i32_1 = arith.constant 0 : i32
    return %arg0, %c0_i32, %c0_i32_0 : i32, i32, i32
  }
  func.func @transform_6(%arg0: i32) -> (i32, i32, i32) {
    %c0_i32 = arith.constant 0 : i32
    %c0_i32_0 = arith.constant 0 : i32
    %c0_i32_1 = arith.constant 0 : i32
    return %arg0, %c0_i32, %c0_i32_0 : i32, i32, i32
  }
  func.func @transform_7(%arg0: i32) -> (i32, i32, i32) {
    %c0_i32 = arith.constant 0 : i32
    %c0_i32_0 = arith.constant 0 : i32
    %c0_i32_1 = arith.constant 0 : i32
    return %arg0, %c0_i32, %c0_i32_0 : i32, i32, i32
  }
}

</mosaic_0001>

<llo_original>
// kernel: tpu_custom_call.1
$region0: #{tpu_custom_call.1}
  #allocation0 [shape = 'u32[]', space=smem, size = 0x4, offset = 0x4, fixed_abs, tag = 'smem constant byte address 0x4 - core index']
  #allocation1 [shape = 'u32[144,128]{1,0:T(1,128)}', space=vmem, size = 0x12000, scoped, tag = 'internal scratch']
  %s0 = inlined_call_operand.vmem [shape: f32[2,8,320], index: 0, kind: input, shape index: {}]
  %s1 = inlined_call_operand.vmem [shape: f32[32,8], index: 1, kind: input, shape index: {}]
  %s2 = inlined_call_operand.vmem [shape: f32[4,16], index: 2, kind: input, shape index: {}]
  %s3 = inlined_call_operand.vmem [shape: f32[64,16], index: 3, kind: input, shape index: {}]
  %s4 = inlined_call_operand.vmem [shape: f32[320,3], index: 4, kind: input, shape index: {}]
  %s5 = inlined_call_operand.hbm [shape: f32[2,4,320], index: 5, kind: output, shape index: {0}]
  %s6 = inlined_call_operand.hbm [shape: f32[2,4,320], index: 6, kind: output, shape index: {1}]
  %s7 = inlined_call_operand.vmem [shape: f32[2,64,3], index: 7, kind: output, shape index: {2}]
  %8 = xla_tuple %s5, %s6, %s7
  %s9 = sld [smem:[#allocation0]]
  $region69: #{tpu_custom_call.1} parent=0
    _
  %s11 = ssub.s32 1, %s9
  %s12 = scalar_select 0, %s11, %s9
  $region1: #{tpu_custom_call.1} parent=0
    #allocation2 [shape = 'u8[12288]{0}', space=vmem, size = 0x3000, scoped, tag = 'output window, operand 0']
    #allocation3 [shape = 's32[2]{0}', space=sflag, size = 0x8, scoped, tag = 'scoped memory for tpu_custom_call.1']
    #allocation4 [shape = 'u8[12288]{0}', space=vmem, size = 0x3000, scoped, tag = 'output window, operand 1']
    #allocation5 [shape = 's32[2]{0}', space=sflag, size = 0x8, scoped, tag = 'scoped memory for tpu_custom_call.1']
    %13 = vsyncpa [#allocation3], 0
    %s14 = scalar_lea.sflag [#allocation3], 1
    %15 = vsyncpa %s14, 0
    %16 = vsyncpa [#allocation5], 0
    %s17 = scalar_lea.sflag [#allocation5], 1
    %18 = vsyncpa %s17, 0
    loop: start=0, step=1, limit=4
    $region2: #{tpu_custom_call.1} parent=1 // loop_pre_header
      _
    $region3: #{tpu_custom_call.1} parent=1 // loop_header
      %s20 = sphi 0, %s24
      %p21 = scmp.ge.s32.totalorder %s20, 4
      %s30 = sphi 0, %s32
      %s33 = sphi 0, %s30
      %s34 = sphi 0, %s33
      %s50 = sphi 0, %s34
      %s54 = sphi 0, %s54
      %s56 = sphi 0, %s54
      %s57 = sphi 0, %s56
      %s71 = sphi 0, %s57
      %s75 = sphi 0, %s75
      %s77 = sphi 0, %s75
      %s78 = sphi 0, %s77
      %s92 = sphi 0, %s78
      %s96 = sphi 0, %s96
      %s98 = sphi 0, %s96
      %s99 = sphi 0, %s98
      %s113 = sphi 0, %s99
      %s117 = sphi 0, %s117
      %s119 = sphi 0, %s117
      %s120 = sphi 0, %s119
      %s134 = sphi 0, %s120
      %s140 = sphi 0, %s142
      %s143 = sphi 0, %s140
      %s144 = sphi 0, %s143
      %s160 = sphi 0, %s144
      %s166 = sphi 0, %s168
      %s169 = sphi 0, %s166
      %s170 = sphi 0, %s169
      %s186 = sphi 0, %s170
      %s192 = sphi 0, %s194
      %s195 = sphi 0, %s192
      %s196 = sphi 0, %s195
      %s212 = sphi 0, %s196
    $region4: #{tpu_custom_call.1} parent=1 // loop_header_branch
      %23 = sbr.rel (%p21) target = $region8
    $region5: #{tpu_custom_call.1} parent=1 // loop_body
      %s25 = ssub.s32 %s20, 1
      %s26 = ssub.s32 %s20, 2
      %s27 = sadd.s32 %s20, 1
      %s28 = ssub.s32 %s20, %s27
      %p29 = scmp.eq.s32.totalorder %s28, 0
      %s31 = sadd.s32 %s30, 1
      %s32 = scalar_select %p29, %s30, %s31
      %p35 = pneg %p29
      %p36 = scmp.eq.s32.totalorder %s20, 1
      %p37 = por %p35, %p36
      %p38 = scmp.ne.s32.totalorder %s30, %s33
      %p39 = scmp.eq.s32.totalorder %s20, 0
      %p40 = por %p38, %p39
      %p41 = scmp.ne.s32.totalorder %s30, %s33
      %p42 = scmp.eq.s32.totalorder %s25, 1
      %p43 = por %p41, %p42
      %p44 = scmp.ne.s32.totalorder %s33, %s34
      %p45 = scmp.eq.s32.totalorder %s25, 0
      %p46 = por %p44, %p45
      %p47 = scmp.ne.s32.totalorder %s33, %s34
      %p48 = scmp.eq.s32.totalorder %s26, 1
      %p49 = por %p47, %p48
      %p51 = scmp.ne.s32.totalorder %s34, %s50
      %p52 = scmp.eq.s32.totalorder %s26, 0
      %p53 = por %p51, %p52
      %s55 = sadd.s32 %s54, 1
      %p58 = scmp.eq.s32.totalorder %s20, 1
      %p59 = scmp.ne.s32.totalorder %s54, %s56
      %p60 = scmp.eq.s32.totalorder %s20, 0
      %p61 = por %p59, %p60
      %p62 = scmp.ne.s32.totalorder %s54, %s56
      %p63 = scmp.eq.s32.totalorder %s25, 1
      %p64 = por %p62, %p63
      %p65 = scmp.ne.s32.totalorder %s56, %s57
      %p66 = scmp.eq.s32.totalorder %s25, 0
      %p67 = por %p65, %p66
      %p68 = scmp.ne.s32.totalorder %s56, %s57
      %p69 = scmp.eq.s32.totalorder %s26, 1
      %p70 = por %p68, %p69
      %p72 = scmp.ne.s32.totalorder %s57, %s71
      %p73 = scmp.eq.s32.totalorder %s26, 0
      %p74 = por %p72, %p73
      %s76 = sadd.s32 %s75, 1
      %p79 = scmp.eq.s32.totalorder %s20, 1
      %p80 = scmp.ne.s32.totalorder %s75, %s77
      %p81 = scmp.eq.s32.totalorder %s20, 0
      %p82 = por %p80, %p81
      %p83 = scmp.ne.s32.totalorder %s75, %s77
      %p84 = scmp.eq.s32.totalorder %s25, 1
      %p85 = por %p83, %p84
      %p86 = scmp.ne.s32.totalorder %s77, %s78
      %p87 = scmp.eq.s32.totalorder %s25, 0
      %p88 = por %p86, %p87
      %p89 = scmp.ne.s32.totalorder %s77, %s78
      %p90 = scmp.eq.s32.totalorder %s26, 1
      %p91 = por %p89, %p90
      %p93 = scmp.ne.s32.totalorder %s78, %s92
      %p94 = scmp.eq.s32.totalorder %s26, 0
      %p95 = por %p93, %p94
      %s97 = sadd.s32 %s96, 1
      %p100 = scmp.eq.s32.totalorder %s20, 1
      %p101 = scmp.ne.s32.totalorder %s96, %s98
      %p102 = scmp.eq.s32.totalorder %s20, 0
      %p103 = por %p101, %p102
      %p104 = scmp.ne.s32.totalorder %s96, %s98
      %p105 = scmp.eq.s32.totalorder %s25, 1
      %p106 = por %p104, %p105
      %p107 = scmp.ne.s32.totalorder %s98, %s99
      %p108 = scmp.eq.s32.totalorder %s25, 0
      %p109 = por %p107, %p108
      %p110 = scmp.ne.s32.totalorder %s98, %s99
      %p111 = scmp.eq.s32.totalorder %s26, 1
      %p112 = por %p110, %p111
      %p114 = scmp.ne.s32.totalorder %s99, %s113
      %p115 = scmp.eq.s32.totalorder %s26, 0
      %p116 = por %p114, %p115
      %s118 = sadd.s32 %s117, 1
      %p121 = scmp.eq.s32.totalorder %s20, 1
      %p122 = scmp.ne.s32.totalorder %s117, %s119
      %p123 = scmp.eq.s32.totalorder %s20, 0
      %p124 = por %p122, %p123
      %p125 = scmp.ne.s32.totalorder %s117, %s119
      %p126 = scmp.eq.s32.totalorder %s25, 1
      %p127 = por %p125, %p126
      %p128 = scmp.ne.s32.totalorder %s119, %s120
      %p129 = scmp.eq.s32.totalorder %s25, 0
      %p130 = por %p128, %p129
      %p131 = scmp.ne.s32.totalorder %s119, %s120
      %p132 = scmp.eq.s32.totalorder %s26, 1
      %p133 = por %p131, %p132
      %p135 = scmp.ne.s32.totalorder %s120, %s134
      %p136 = scmp.eq.s32.totalorder %s26, 0
      %p137 = por %p135, %p136
      %s138 = ssub.s32 %s20, %s27
      %p139 = scmp.eq.s32.totalorder %s138, 0
      %s141 = sadd.s32 %s140, 1
      %s142 = scalar_select %p139, %s140, %s141
      %p145 = pneg %p139
      %p146 = scmp.eq.s32.totalorder %s20, 1
      %p147 = por %p145, %p146
      %p148 = scmp.ne.s32.totalorder %s140, %s143
      %p149 = scmp.eq.s32.totalorder %s20, 0
      %p150 = por %p148, %p149
      %p151 = scmp.ne.s32.totalorder %s140, %s143
      %p152 = scmp.eq.s32.totalorder %s25, 1
      %p153 = por %p151, %p152
      %p154 = scmp.ne.s32.totalorder %s143, %s144
      %p155 = scmp.eq.s32.totalorder %s25, 0
      %p156 = por %p154, %p155
      %p157 = scmp.ne.s32.totalorder %s143, %s144
      %p158 = scmp.eq.s32.totalorder %s26, 1
      %p159 = por %p157, %p158
      %p161 = scmp.ne.s32.totalorder %s144, %s160
      %p162 = scmp.eq.s32.totalorder %s26, 0
      %p163 = por %p161, %p162
      %s164 = ssub.s32 %s20, %s27
      %p165 = scmp.eq.s32.totalorder %s164, 0
      %s167 = sadd.s32 %s166, 1
      %s168 = scalar_select %p165, %s166, %s167
      %p171 = pneg %p165
      %p172 = scmp.eq.s32.totalorder %s20, 1
      %p173 = por %p171, %p172
      %p174 = scmp.ne.s32.totalorder %s166, %s169
      %p175 = scmp.eq.s32.totalorder %s20, 0
      %p176 = por %p174, %p175
      %p177 = scmp.ne.s32.totalorder %s166, %s169
      %p178 = scmp.eq.s32.totalorder %s25, 1
      %p179 = por %p177, %p178
      %p180 = scmp.ne.s32.totalorder %s169, %s170
      %p181 = scmp.eq.s32.totalorder %s25, 0
      %p182 = por %p180, %p181
      %p183 = scmp.ne.s32.totalorder %s169, %s170
      %p184 = scmp.eq.s32.totalorder %s26, 1
      %p185 = por %p183, %p184
      %p187 = scmp.ne.s32.totalorder %s170, %s186
      %p188 = scmp.eq.s32.totalorder %s26, 0
      %p189 = por %p187, %p188
      %s190 = ssub.s32 %s20, %s27
      %p191 = scmp.eq.s32.totalorder %s190, 0
      %s193 = sadd.s32 %s192, 1
      %s194 = scalar_select %p191, %s192, %s193
      %p197 = pneg %p191
      %p198 = scmp.eq.s32.totalorder %s20, 1
      %p199 = por %p197, %p198
      %p200 = scmp.ne.s32.totalorder %s192, %s195
      %p201 = scmp.eq.s32.totalorder %s20, 0
      %p202 = por %p200, %p201
      %p203 = scmp.ne.s32.totalorder %s192, %s195
      %p204 = scmp.eq.s32.totalorder %s25, 1
      %p205 = por %p203, %p204
      %p206 = scmp.ne.s32.totalorder %s195, %s196
      %p207 = scmp.eq.s32.totalorder %s25, 0
      %p208 = por %p206, %p207
      %p209 = scmp.ne.s32.totalorder %s195, %s196
      %p210 = scmp.eq.s32.totalorder %s26, 1
      %p211 = por %p209, %p210
      %p213 = scmp.ne.s32.totalorder %s196, %s212
      %p214 = scmp.eq.s32.totalorder %s26, 0
      %p215 = por %p213, %p214
      %p216 = scmp.le.s32.totalorder 1, %s20
      %p217 = scmp.lt.s32.totalorder %s20, 3
      %p218 = pnand %p216, %p217
      %p219 = pneg %p218
      // Predicated region
      $region9: #{tpu_custom_call.1} parent=5 // pred_check
        _
      $region10: #{tpu_custom_call.1} parent=5 // pred_check_branch
        %221 = sbr.rel (%p218) target = $region12
      $region11: #{tpu_custom_call.1} parent=5 // pred_region
        %s222 = ssub.s32 %s20, 1
        // Predicated region
        $region13: #{tpu_custom_call.1} parent=11 // pred_check
          %p223 = pneg %p67
        $region14: #{tpu_custom_call.1} parent=11 // pred_check_branch
          %225 = sbr.rel (%p223) target = $region16
        $region15: #{tpu_custom_call.1} parent=11 // pred_region
          _
        $region16: #{tpu_custom_call.1} parent=11 // pred_fallthru
          _
        // Predicated region
        $region17: #{tpu_custom_call.1} parent=11 // pred_check
          %p226 = pneg %p88
        $region18: #{tpu_custom_call.1} parent=11 // pred_check_branch
          %228 = sbr.rel (%p226) target = $region20
        $region19: #{tpu_custom_call.1} parent=11 // pred_region
          _
        $region20: #{tpu_custom_call.1} parent=11 // pred_fallthru
          _
        // Predicated region
        $region21: #{tpu_custom_call.1} parent=11 // pred_check
          %p229 = pneg %p109
        $region22: #{tpu_custom_call.1} parent=11 // pred_check_branch
          %231 = sbr.rel (%p229) target = $region24
        $region23: #{tpu_custom_call.1} parent=11 // pred_region
          _
        $region24: #{tpu_custom_call.1} parent=11 // pred_fallthru
          _
        // Predicated region
        $region25: #{tpu_custom_call.1} parent=11 // pred_check
          %p232 = pneg %p130
        $region26: #{tpu_custom_call.1} parent=11 // pred_check_branch
          %234 = sbr.rel (%p232) target = $region28
        $region27: #{tpu_custom_call.1} parent=11 // pred_region
          _
        $region28: #{tpu_custom_call.1} parent=11 // pred_fallthru
          _
      $region12: #{tpu_custom_call.1} parent=5 // pred_fallthru
        _
      %p235 = scmp.lt.s32.totalorder %s20, 2
      // Predicated region
      $region29: #{tpu_custom_call.1} parent=5 // pred_check
        %p236 = pneg %p235
      $region30: #{tpu_custom_call.1} parent=5 // pred_check_branch
        %238 = sbr.rel (%p236) target = $region32
      $region31: #{tpu_custom_call.1} parent=5 // pred_region
        // Predicated region
        $region33: #{tpu_custom_call.1} parent=31 // pred_check
          %p239 = pneg %p40
        $region34: #{tpu_custom_call.1} parent=31 // pred_check_branch
          %241 = sbr.rel (%p239) target = $region36
        $region35: #{tpu_custom_call.1} parent=31 // pred_region
          %p242 = scmp.lt.s32.totalorder %s20, 1
          %s243 = scalar_select %p242, %s20, 1
          %s244 = smul.addr %s243, 3
          %s245 = smul.addr %s244, 8
          %s246 = scalar_lea.vmem %s0, %s245
        $region36: #{tpu_custom_call.1} parent=31 // pred_fallthru
          _
      $region32: #{tpu_custom_call.1} parent=5 // pred_fallthru
        _
      %p247 = scmp.le.s32.totalorder 1, %s20
      %p248 = scmp.lt.s32.totalorder %s20, 3
      %p249 = pnand %p247, %p248
      %p250 = pneg %p249
      // Predicated region
      $region37: #{tpu_custom_call.1} parent=5 // pred_check
        _
      $region38: #{tpu_custom_call.1} parent=5 // pred_check_branch
        %252 = sbr.rel (%p249) target = $region40
      $region39: #{tpu_custom_call.1} parent=5 // pred_region
        %s253 = ssub.s32 %s20, 1
        %p254 = scmp.lt.s32.totalorder %s25, 1
        %s255 = scalar_select %p254, %s25, 1
        %s256 = smul.addr %s255, 3
        %s257 = smul.addr %s256, 8
        %s258 = scalar_lea.vmem %s0, %s257
        %p259 = pneg %p46
        %p260 = pneg %p43
        %p261 = pneg %p67
        %p262 = pneg %p64
        %p263 = pneg %p88
        %p264 = pneg %p85
        %p265 = pneg %p109
        %p266 = pneg %p106
        %p267 = pneg %p130
        %p268 = pneg %p127
        %p269 = pneg %p156
        %p270 = pneg %p153
        %s271 = sand.u32 %s143, 1
        %s272 = scalar_lea.sflag [#allocation3], %s271
        %s273 = sand.u32 %s143, 1
        %s274 = smul.addr %s273, 12
        %s275 = scalar_lea.vmem [#allocation2], %s274
        %p276 = pneg %p182
        %p277 = pneg %p179
        %s278 = sand.u32 %s169, 1
        %s279 = scalar_lea.sflag [#allocation5], %s278
        %s280 = sand.u32 %s169, 1
        %s281 = smul.addr %s280, 12
        %s282 = scalar_lea.vmem [#allocation4], %s281
        %p283 = pneg %p208
        %p284 = pneg %p205
        %p285 = scmp.lt.s32.totalorder %s25, 1
        %s286 = scalar_select %p285, %s25, 1
        %s287 = smul.addr %s286, 8
        %s288 = smul.addr %s287, 8
        %s289 = scalar_lea.vmem %s7, %s288
        %p290 = scmp.lt.s32.totalorder %s25, 1
        %s291 = scalar_select %p290, %s25, 1
        %s292 = smul.addr %s291, 3
        %s293 = smul.addr %s292, 8
        %s294 = scalar_lea.vmem %s0, %s293
        %p295 = scmp.lt.s32.totalorder %s25, 1
        %s296 = scalar_select %p295, %s25, 1
        %s297 = smul.addr %s296, 8
        %s298 = smul.addr %s297, 8
        %s299 = scalar_lea.vmem %s7, %s298
        %v300 = vld [vmem:[%s294] sm:$0xff]
        %v301 = vld [vmem:[%s294 + $0x8] sm:$0xff]
        %v302 = vld [vmem:[%s294 + $0x10] sm:$0xff]
        %v303 = vld [vmem:[%s1] sm:$0xff]
        %v304 = vld [vmem:[%s1 + $0x8] sm:$0xff]
        %v305 = vld [vmem:[%s1 + $0x10] sm:$0xff]
        %v306 = vld [vmem:[%s1 + $0x18] sm:$0xff]
        %vm307 = vcmask 64512
        %v309 = vsel %vm307, %v303, 0
        %v312 = vsel %vm307, %v304, 0
        %v315 = vsel %vm307, %v305, 0
        %v318 = vsel %vm307, %v306, 0
        %320 = vmatprep.subr.mxu0 0.0
        %321 = vmatpush1.msra.mxu0 0.0
        %322 = vmatprep.subr.mxu0 0.0
        %323 = vmatpush1.msra.mxu0 0.0
        %324 = vmatprep.subr.mxu0 0.0
        %325 = vmatpush1.msra.mxu0 0.0
        %326 = vmatprep.subr.mxu0 0.0
        %327 = vmatpush1.msra.mxu0 0.0
        %328 = vmatprep.subr.mxu0 0.0
        %329 = vmatpush1.msra.mxu0 0.0
        %330 = vmatprep.subr.mxu0 0.0
        %331 = vmatpush1.msra.mxu0 0.0
        %332 = vmatprep.subr.mxu0 0.0
        %333 = vmatpush1.msra.mxu0 0.0
        %334 = vmatprep.subr.mxu0 0.0
        %335 = vmatpush1.msra.mxu0 0.0
        %336 = vmatprep.subr.mxu0 0.0
        %337 = vmatpush1.msra.mxu0 0.0
        %338 = vmatprep.subr.mxu0 0.0
        %339 = vmatpush1.msra.mxu0 0.0
        %340 = vmatprep.subr.mxu0 0.0
        %341 = vmatpush1.msra.mxu0 0.0
        %342 = vmatprep.subr.mxu0 0.0
        %343 = vmatpush1.msra.mxu0 0.0
        %344 = vmatprep.subr.mxu0 0.0
        %345 = vmatpush1.msra.mxu0 0.0
        %346 = vmatprep.subr.mxu0 0.0
        %347 = vmatpush1.msra.mxu0 0.0
        %348 = vmatprep.subr.mxu0 0.0
        %349 = vmatpush1.msra.mxu0 0.0
        %350 = vmatprep.subr.mxu0 %v301
        %351 = vmatpush1.msra.mxu0 %v300
        %352 = vmatprep.subr.mxu0 0.0
        %353 = vmatpush2.msra.mxu0 0.0
        %354 = vmatprep.subr.mxu0 0.0
        %355 = vmatpush2.msra.mxu0 0.0
        %356 = vmatprep.subr.mxu0 0.0
        %357 = vmatpush2.msra.mxu0 0.0
        %358 = vmatprep.subr.mxu0 0.0
        %359 = vmatpush2.msra.mxu0 0.0
        %360 = vmatprep.subr.mxu0 0.0
        %361 = vmatpush2.msra.mxu0 0.0
        %362 = vmatprep.subr.mxu0 0.0
        %363 = vmatpush2.msra.mxu0 0.0
        %364 = vmatprep.subr.mxu0 0.0
        %365 = vmatpush2.msra.mxu0 0.0
        %366 = vmatprep.subr.mxu0 0.0
        %367 = vmatpush2.msra.mxu0 0.0
        %368 = vmatprep.subr.mxu0 0.0
        %369 = vmatpush2.msra.mxu0 0.0
        %370 = vmatprep.subr.mxu0 0.0
        %371 = vmatpush2.msra.mxu0 0.0
        %372 = vmatprep.subr.mxu0 0.0
        %373 = vmatpush2.msra.mxu0 0.0
        %374 = vmatprep.subr.mxu0 0.0
        %375 = vmatpush2.msra.mxu0 0.0
        %376 = vmatprep.subr.mxu0 0.0
        %377 = vmatpush2.msra.mxu0 0.0
        %378 = vmatprep.subr.mxu0 0.0
        %379 = vmatpush2.msra.mxu0 0.0
        %380 = vmatprep.subr.mxu0 0.0
        %381 = vmatpush2.msra.mxu0 0.0
        %382 = vmatprep.subr.mxu0 0.0
        %383 = vmatpush2.msra.mxu0 0.0
        %384 = vmatprep.mubr.f32.mxu0 0.0
        %385 = vmatmul.mubr.f32.gmra.mxu0 %v309
        %v386 = vpop.f32.mrf.mxu0
        %v387 = vadd.f32 0.0, %v386
        %v388 = vpop.f32.mrf.mxu0
        %v389 = vadd.f32 0.0, %v388
        %390 = vmatprep.mubr.f32.mxu0 0.0
        %391 = vmatmul.mubr.f32.gmra.mxu0 %v312
        %v392 = vpop.f32.mrf.mxu0
        %v393 = vadd.f32 0.0, %v392
        %v394 = vpop.f32.mrf.mxu0
        %v395 = vadd.f32 0.0, %v394
        %396 = vmatprep.mubr.f32.mxu0 0.0
        %397 = vmatmul.mubr.f32.gmra.mxu0 %v315
        %v398 = vpop.f32.mrf.mxu0
        %v399 = vadd.f32 0.0, %v398
        %v400 = vpop.f32.mrf.mxu0
        %v401 = vadd.f32 0.0, %v400
        %402 = vmatprep.mubr.f32.mxu0 0.0
        %403 = vmatmul.mubr.f32.gmra.mxu0 %v318
        %v404 = vpop.f32.mrf.mxu0
        %v405 = vadd.f32 0.0, %v404
        %v406 = vpop.f32.mrf.mxu0
        %v407 = vadd.f32 0.0, %v406
        %408 = vdwg.mxu0
        %409 = vmatprep.subr.mxu0 0.0
        %410 = vmatpush1.msra.mxu0 0.0
        %411 = vmatprep.subr.mxu0 0.0
        %412 = vmatpush1.msra.mxu0 0.0
        %413 = vmatprep.subr.mxu0 0.0
        %414 = vmatpush1.msra.mxu0 0.0
        %415 = vmatprep.subr.mxu0 0.0
        %416 = vmatpush1.msra.mxu0 0.0
        %417 = vmatprep.subr.mxu0 0.0
        %418 = vmatpush1.msra.mxu0 0.0
        %419 = vmatprep.subr.mxu0 0.0
        %420 = vmatpush1.msra.mxu0 0.0
        %421 = vmatprep.subr.mxu0 0.0
        %422 = vmatpush1.msra.mxu0 0.0
        %423 = vmatprep.subr.mxu0 0.0
        %424 = vmatpush1.msra.mxu0 0.0
        %425 = vmatprep.subr.mxu0 0.0
        %426 = vmatpush1.msra.mxu0 0.0
        %427 = vmatprep.subr.mxu0 0.0
        %428 = vmatpush1.msra.mxu0 0.0
        %429 = vmatprep.subr.mxu0 0.0
        %430 = vmatpush1.msra.mxu0 0.0
        %431 = vmatprep.subr.mxu0 0.0
        %432 = vmatpush1.msra.mxu0 0.0
        %433 = vmatprep.subr.mxu0 0.0
        %434 = vmatpush1.msra.mxu0 0.0
        %435 = vmatprep.subr.mxu0 0.0
        %436 = vmatpush1.msra.mxu0 0.0
        %437 = vmatprep.subr.mxu0 0.0
        %438 = vmatpush1.msra.mxu0 0.0
        %439 = vmatprep.subr.mxu0 0.0
        %440 = vmatpush1.msra.mxu0 %v302
        %441 = vmatprep.subr.mxu0 0.0
        %442 = vmatpush2.msra.mxu0 0.0
        %443 = vmatprep.subr.mxu0 0.0
        %444 = vmatpush2.msra.mxu0 0.0
        %445 = vmatprep.subr.mxu0 0.0
        %446 = vmatpush2.msra.mxu0 0.0
        %447 = vmatprep.subr.mxu0 0.0
        %448 = vmatpush2.msra.mxu0 0.0
        %449 = vmatprep.subr.mxu0 0.0
        %450 = vmatpush2.msra.mxu0 0.0
        %451 = vmatprep.subr.mxu0 0.0
        %452 = vmatpush2.msra.mxu0 0.0
        %453 = vmatprep.subr.mxu0 0.0
        %454 = vmatpush2.msra.mxu0 0.0
        %455 = vmatprep.subr.mxu0 0.0
        %456 = vmatpush2.msra.mxu0 0.0
        %457 = vmatprep.subr.mxu0 0.0
        %458 = vmatpush2.msra.mxu0 0.0
        %459 = vmatprep.subr.mxu0 0.0
        %460 = vmatpush2.msra.mxu0 0.0
        %461 = vmatprep.subr.mxu0 0.0
        %462 = vmatpush2.msra.mxu0 0.0
        %463 = vmatprep.subr.mxu0 0.0
        %464 = vmatpush2.msra.mxu0 0.0
        %465 = vmatprep.subr.mxu0 0.0
        %466 = vmatpush2.msra.mxu0 0.0
        %467 = vmatprep.subr.mxu0 0.0
        %468 = vmatpush2.msra.mxu0 0.0
        %469 = vmatprep.subr.mxu0 0.0
        %470 = vmatpush2.msra.mxu0 0.0
        %471 = vmatprep.subr.mxu0 0.0
        %472 = vmatpush2.msra.mxu0 0.0
        %473 = vmatprep.mubr.f32.mxu0 0.0
        %474 = vmatmul.mubr.f32.gmra.mxu0 %v309
        %v475 = vpop.f32.mrf.mxu0
        %v476 = vadd.f32 0.0, %v475
        %v477 = vpop.f32.mrf.mxu0
        %478 = vmatprep.mubr.f32.mxu0 0.0
        %479 = vmatmul.mubr.f32.gmra.mxu0 %v312
        %v480 = vpop.f32.mrf.mxu0
        %v481 = vadd.f32 0.0, %v480
        %v482 = vpop.f32.mrf.mxu0
        %483 = vmatprep.mubr.f32.mxu0 0.0
        %484 = vmatmul.mubr.f32.gmra.mxu0 %v315
        %v485 = vpop.f32.mrf.mxu0
        %v486 = vadd.f32 0.0, %v485
        %v487 = vpop.f32.mrf.mxu0
        %488 = vmatprep.mubr.f32.mxu0 0.0
        %489 = vmatmul.mubr.f32.gmra.mxu0 %v318
        %v490 = vpop.f32.mrf.mxu0
        %v491 = vadd.f32 0.0, %v490
        %v492 = vpop.f32.mrf.mxu0
        %493 = vdwg.mxu0
        %v494 = vtanh.pop %v387
        %v495 = vtanh.pop %v389
        %v496 = vtanh.pop %v476
        %v497 = vtanh.pop %v393
        %v498 = vtanh.pop %v395
        %v499 = vtanh.pop %v481
        %v500 = vxor.u32 %v399, 2147483648
        %v501 = vxor.u32 %v401, 2147483648
        %v502 = vxor.u32 %v486, 2147483648
        %v503 = vxor.u32 %v405, 2147483648
        %v504 = vxor.u32 %v407, 2147483648
        %v505 = vxor.u32 %v491, 2147483648
        %v506 = vmul.f32 %v500, 1.442695
        %v507 = vpow.pop %v506
        %v508 = vmul.f32 %v501, 1.442695
        %v509 = vpow.pop %v508
        %v510 = vmul.f32 %v502, 1.442695
        %v511 = vpow.pop %v510
        %v512 = vmul.f32 %v503, 1.442695
        %v513 = vpow.pop %v512
        %v514 = vmul.f32 %v504, 1.442695
        %v515 = vpow.pop %v514
        %v516 = vmul.f32 %v505, 1.442695
        %v517 = vpow.pop %v516
        %v518 = vadd.f32 %v507, 1.0
        %v519 = vadd.f32 %v509, 1.0
        %v520 = vadd.f32 %v511, 1.0
        %v521 = vadd.f32 %v513, 1.0
        %v522 = vadd.f32 %v515, 1.0
        %v523 = vadd.f32 %v517, 1.0
        %v524 = vrcp.pop %v518
        %v525 = vmul.f32 1.0, %v524
        %v526 = vrcp.pop %v519
        %v527 = vmul.f32 1.0, %v526
        %v528 = vrcp.pop %v520
        %v529 = vmul.f32 1.0, %v528
        %v530 = vrcp.pop %v521
        %v531 = vmul.f32 1.0, %v530
        %v532 = vrcp.pop %v522
        %v533 = vmul.f32 1.0, %v532
        %v534 = vrcp.pop %v523
        %v535 = vmul.f32 1.0, %v534
        %v536 = vmul.f32 %v494, %v525
        %v537 = vmul.f32 %v495, %v527
        %v538 = vmul.f32 %v496, %v529
        %v539 = vmul.f32 %v497, %v531
        %v540 = vmul.f32 %v498, %v533
        %v541 = vmul.f32 %v499, %v535
        %v542 = vld [vmem:[%s2] sm:$0xf]
        %vm543 = vcmask 130048
        %v545 = vsel %vm543, %v542, 0
        %547 = vmatprep.subr.mxu0 0.0
        %548 = vmatpush1.msra.mxu0 0.0
        %549 = vmatprep.subr.mxu0 0.0
        %550 = vmatpush1.msra.mxu0 0.0
        %551 = vmatprep.subr.mxu0 0.0
        %552 = vmatpush1.msra.mxu0 0.0
        %553 = vmatprep.subr.mxu0 0.0
        %554 = vmatpush1.msra.mxu0 0.0
        %555 = vmatprep.subr.mxu0 0.0
        %556 = vmatpush1.msra.mxu0 0.0
        %557 = vmatprep.subr.mxu0 0.0
        %558 = vmatpush1.msra.mxu0 0.0
        %559 = vmatprep.subr.mxu0 0.0
        %560 = vmatpush1.msra.mxu0 0.0
        %561 = vmatprep.subr.mxu0 0.0
        %562 = vmatpush1.msra.mxu0 0.0
        %563 = vmatprep.subr.mxu0 0.0
        %564 = vmatpush1.msra.mxu0 0.0
        %565 = vmatprep.subr.mxu0 0.0
        %566 = vmatpush1.msra.mxu0 0.0
        %567 = vmatprep.subr.mxu0 0.0
        %568 = vmatpush1.msra.mxu0 0.0
        %569 = vmatprep.subr.mxu0 0.0
        %570 = vmatpush1.msra.mxu0 0.0
        %571 = vmatprep.subr.mxu0 0.0
        %572 = vmatpush1.msra.mxu0 0.0
        %573 = vmatprep.subr.mxu0 0.0
        %574 = vmatpush1.msra.mxu0 0.0
        %575 = vmatprep.subr.mxu0 %v540
        %576 = vmatpush1.msra.mxu0 %v539
        %577 = vmatprep.subr.mxu0 %v537
        %578 = vmatpush1.msra.mxu0 %v536
        %579 = vmatprep.subr.mxu0 0.0
        %580 = vmatpush2.msra.mxu0 0.0
        %581 = vmatprep.subr.mxu0 0.0
        %582 = vmatpush2.msra.mxu0 0.0
        %583 = vmatprep.subr.mxu0 0.0
        %584 = vmatpush2.msra.mxu0 0.0
        %585 = vmatprep.subr.mxu0 0.0
        %586 = vmatpush2.msra.mxu0 0.0
        %587 = vmatprep.subr.mxu0 0.0
        %588 = vmatpush2.msra.mxu0 0.0
        %589 = vmatprep.subr.mxu0 0.0
        %590 = vmatpush2.msra.mxu0 0.0
        %591 = vmatprep.subr.mxu0 0.0
        %592 = vmatpush2.msra.mxu0 0.0
        %593 = vmatprep.subr.mxu0 0.0
        %594 = vmatpush2.msra.mxu0 0.0
        %595 = vmatprep.subr.mxu0 0.0
        %596 = vmatpush2.msra.mxu0 0.0
        %597 = vmatprep.subr.mxu0 0.0
        %598 = vmatpush2.msra.mxu0 0.0
        %599 = vmatprep.subr.mxu0 0.0
        %600 = vmatpush2.msra.mxu0 0.0
        %601 = vmatprep.subr.mxu0 0.0
        %602 = vmatpush2.msra.mxu0 0.0
        %603 = vmatprep.subr.mxu0 0.0
        %604 = vmatpush2.msra.mxu0 0.0
        %605 = vmatprep.subr.mxu0 0.0
        %606 = vmatpush2.msra.mxu0 0.0
        %607 = vmatprep.subr.mxu0 0.0
        %608 = vmatpush2.msra.mxu0 0.0
        %609 = vmatprep.subr.mxu0 0.0
        %610 = vmatpush2.msra.mxu0 0.0
        %611 = vmatprep.mubr.f32.mxu0 0.0
        %612 = vmatmul.mubr.f32.gmra.mxu0 %v545
        %v613 = vpop.f32.mrf.mxu0
        %v614 = vadd.f32 0.0, %v613
        %v615 = vpop.f32.mrf.mxu0
        %v616 = vadd.f32 0.0, %v615
        %617 = vdwg.mxu0
        %618 = vmatprep.subr.mxu0 0.0
        %619 = vmatpush1.msra.mxu0 0.0
        %620 = vmatprep.subr.mxu0 0.0
        %621 = vmatpush1.msra.mxu0 0.0
        %622 = vmatprep.subr.mxu0 0.0
        %623 = vmatpush1.msra.mxu0 0.0
        %624 = vmatprep.subr.mxu0 0.0
        %625 = vmatpush1.msra.mxu0 0.0
        %626 = vmatprep.subr.mxu0 0.0
        %627 = vmatpush1.msra.mxu0 0.0
        %628 = vmatprep.subr.mxu0 0.0
        %629 = vmatpush1.msra.mxu0 0.0
        %630 = vmatprep.subr.mxu0 0.0
        %631 = vmatpush1.msra.mxu0 0.0
        %632 = vmatprep.subr.mxu0 0.0
        %633 = vmatpush1.msra.mxu0 0.0
        %634 = vmatprep.subr.mxu0 0.0
        %635 = vmatpush1.msra.mxu0 0.0
        %636 = vmatprep.subr.mxu0 0.0
        %637 = vmatpush1.msra.mxu0 0.0
        %638 = vmatprep.subr.mxu0 0.0
        %639 = vmatpush1.msra.mxu0 0.0
        %640 = vmatprep.subr.mxu0 0.0
        %641 = vmatpush1.msra.mxu0 0.0
        %642 = vmatprep.subr.mxu0 0.0
        %643 = vmatpush1.msra.mxu0 0.0
        %644 = vmatprep.subr.mxu0 0.0
        %645 = vmatpush1.msra.mxu0 0.0
        %646 = vmatprep.subr.mxu0 0.0
        %647 = vmatpush1.msra.mxu0 %v541
        %648 = vmatprep.subr.mxu0 0.0
        %649 = vmatpush1.msra.mxu0 %v538
        %650 = vmatprep.subr.mxu0 0.0
        %651 = vmatpush2.msra.mxu0 0.0
        %652 = vmatprep.subr.mxu0 0.0
        %653 = vmatpush2.msra.mxu0 0.0
        %654 = vmatprep.subr.mxu0 0.0
        %655 = vmatpush2.msra.mxu0 0.0
        %656 = vmatprep.subr.mxu0 0.0
        %657 = vmatpush2.msra.mxu0 0.0
        %658 = vmatprep.subr.mxu0 0.0
        %659 = vmatpush2.msra.mxu0 0.0
        %660 = vmatprep.subr.mxu0 0.0
        %661 = vmatpush2.msra.mxu0 0.0
        %662 = vmatprep.subr.mxu0 0.0
        %663 = vmatpush2.msra.mxu0 0.0
        %664 = vmatprep.subr.mxu0 0.0
        %665 = vmatpush2.msra.mxu0 0.0
        %666 = vmatprep.subr.mxu0 0.0
        %667 = vmatpush2.msra.mxu0 0.0
        %668 = vmatprep.subr.mxu0 0.0
        %669 = vmatpush2.msra.mxu0 0.0
        %670 = vmatprep.subr.mxu0 0.0
        %671 = vmatpush2.msra.mxu0 0.0
        %672 = vmatprep.subr.mxu0 0.0
        %673 = vmatpush2.msra.mxu0 0.0
        %674 = vmatprep.subr.mxu0 0.0
        %675 = vmatpush2.msra.mxu0 0.0
        %676 = vmatprep.subr.mxu0 0.0
        %677 = vmatpush2.msra.mxu0 0.0
        %678 = vmatprep.subr.mxu0 0.0
        %679 = vmatpush2.msra.mxu0 0.0
        %680 = vmatprep.subr.mxu0 0.0
        %681 = vmatpush2.msra.mxu0 0.0
        %682 = vmatprep.mubr.f32.mxu0 0.0
        %683 = vmatmul.mubr.f32.gmra.mxu0 %v545
        %v684 = vpop.f32.mrf.mxu0
        %v685 = vadd.f32 0.0, %v684
        %v686 = vpop.f32.mrf.mxu0
        %687 = vdwg.mxu0
        %v690 = vcombine.low %v614, %v616
        %692 = vst [vmem:[%s282] sm:$0xff] %v690
        %vm693 = vcmask 519168
        %694 = vst.msk [vmem:[%s282 + $0x8] sm:$0xf] %vm693, %v685
        %v695 = vadd.f32 %v614, %v300
        %v696 = vadd.f32 %v616, %v301
        %v697 = vadd.f32 %v685, %v302
        %v700 = vcombine.low %v695, %v696
        %702 = vst [vmem:[%s275] sm:$0xff] %v700
        %703 = vst.msk [vmem:[%s275 + $0x8] sm:$0xf] %vm693, %v697
        %v704 = vld [vmem:[%s4] sm:$0xff]
        %v705 = vld [vmem:[%s4 + $0x8] sm:$0xff]
        %v706 = vld [vmem:[%s4 + $0x10] sm:$0xff]
        %v707 = vld [vmem:[%s4 + $0x18] sm:$0xff]
        %v708 = vld [vmem:[%s4 + $0x20] sm:$0xff]
        %v709 = vld [vmem:[%s4 + $0x28] sm:$0xff]
        %v710 = vld [vmem:[%s4 + $0x30] sm:$0xff]
        %v711 = vld [vmem:[%s4 + $0x38] sm:$0xff]
        %v712 = vld [vmem:[%s4 + $0x40] sm:$0xff]
        %v713 = vld [vmem:[%s4 + $0x48] sm:$0xff]
        %v714 = vld [vmem:[%s4 + $0x50] sm:$0xff]
        %v715 = vld [vmem:[%s4 + $0x58] sm:$0xff]
        %v716 = vld [vmem:[%s4 + $0x60] sm:$0xff]
        %v717 = vld [vmem:[%s4 + $0x68] sm:$0xff]
        %v718 = vld [vmem:[%s4 + $0x70] sm:$0xff]
        %v719 = vld [vmem:[%s4 + $0x78] sm:$0xff]
        %v720 = vld [vmem:[%s4 + $0x80] sm:$0xff]
        %v721 = vld [vmem:[%s4 + $0x88] sm:$0xff]
        %v722 = vld [vmem:[%s4 + $0x90] sm:$0xff]
        %v723 = vld [vmem:[%s4 + $0x98] sm:$0xff]
        %v724 = vld [vmem:[%s4 + $0xa0] sm:$0xff]
        %v725 = vld [vmem:[%s4 + $0xa8] sm:$0xff]
        %v726 = vld [vmem:[%s4 + $0xb0] sm:$0xff]
        %v727 = vld [vmem:[%s4 + $0xb8] sm:$0xff]
        %v728 = vld [vmem:[%s4 + $0xc0] sm:$0xff]
        %v729 = vld [vmem:[%s4 + $0xc8] sm:$0xff]
        %v730 = vld [vmem:[%s4 + $0xd0] sm:$0xff]
        %v731 = vld [vmem:[%s4 + $0xd8] sm:$0xff]
        %v732 = vld [vmem:[%s4 + $0xe0] sm:$0xff]
        %v733 = vld [vmem:[%s4 + $0xe8] sm:$0xff]
        %v734 = vld [vmem:[%s4 + $0xf0] sm:$0xff]
        %v735 = vld [vmem:[%s4 + $0xf8] sm:$0xff]
        %v736 = vld [vmem:[%s4 + $0x100] sm:$0xff]
        %v737 = vld [vmem:[%s4 + $0x108] sm:$0xff]
        %v738 = vld [vmem:[%s4 + $0x110] sm:$0xff]
        %v739 = vld [vmem:[%s4 + $0x118] sm:$0xff]
        %v740 = vld [vmem:[%s4 + $0x120] sm:$0xff]
        %v741 = vld [vmem:[%s4 + $0x128] sm:$0xff]
        %v742 = vld [vmem:[%s4 + $0x130] sm:$0xff]
        %v743 = vld [vmem:[%s4 + $0x138] sm:$0xff]
        %vm744 = vcmask 523264
        %v746 = vsel %vm744, %v538, 0
        %v749 = vsel %vm744, %v541, 0
        %751 = vmatprep.subr.mxu0 0.0
        %752 = vmatpush1.msra.mxu0 %v719
        %753 = vmatprep.subr.mxu0 0.0
        %754 = vmatpush1.msra.mxu0 %v718
        %755 = vmatprep.subr.mxu0 0.0
        %756 = vmatpush1.msra.mxu0 %v717
        %757 = vmatprep.subr.mxu0 0.0
        %758 = vmatpush1.msra.mxu0 %v716
        %759 = vmatprep.subr.mxu0 0.0
        %760 = vmatpush1.msra.mxu0 %v715
        %761 = vmatprep.subr.mxu0 0.0
        %762 = vmatpush1.msra.mxu0 %v714
        %763 = vmatprep.subr.mxu0 0.0
        %764 = vmatpush1.msra.mxu0 %v713
        %765 = vmatprep.subr.mxu0 0.0
        %766 = vmatpush1.msra.mxu0 %v712
        %767 = vmatprep.subr.mxu0 0.0
        %768 = vmatpush1.msra.mxu0 %v711
        %769 = vmatprep.subr.mxu0 0.0
        %770 = vmatpush1.msra.mxu0 %v710
        %771 = vmatprep.subr.mxu0 0.0
        %772 = vmatpush1.msra.mxu0 %v709
        %773 = vmatprep.subr.mxu0 0.0
        %774 = vmatpush1.msra.mxu0 %v708
        %775 = vmatprep.subr.mxu0 0.0
        %776 = vmatpush1.msra.mxu0 %v707
        %777 = vmatprep.subr.mxu0 0.0
        %778 = vmatpush1.msra.mxu0 %v706
        %779 = vmatprep.subr.mxu0 0.0
        %780 = vmatpush1.msra.mxu0 %v705
        %781 = vmatprep.subr.mxu0 0.0
        %782 = vmatpush1.msra.mxu0 %v704
        %783 = vmatprep.subr.mxu0 0.0
        %784 = vmatpush2.msra.mxu0 %v735
        %785 = vmatprep.subr.mxu0 0.0
        %786 = vmatpush2.msra.mxu0 %v734
        %787 = vmatprep.subr.mxu0 0.0
        %788 = vmatpush2.msra.mxu0 %v733
        %789 = vmatprep.subr.mxu0 0.0
        %790 = vmatpush2.msra.mxu0 %v732
        %791 = vmatprep.subr.mxu0 0.0
        %792 = vmatpush2.msra.mxu0 %v731
        %793 = vmatprep.subr.mxu0 0.0
        %794 = vmatpush2.msra.mxu0 %v730
        %795 = vmatprep.subr.mxu0 0.0
        %796 = vmatpush2.msra.mxu0 %v729
        %797 = vmatprep.subr.mxu0 0.0
        %798 = vmatpush2.msra.mxu0 %v728
        %799 = vmatprep.subr.mxu0 0.0
        %800 = vmatpush2.msra.mxu0 %v727
        %801 = vmatprep.subr.mxu0 0.0
        %802 = vmatpush2.msra.mxu0 %v726
        %803 = vmatprep.subr.mxu0 0.0
        %804 = vmatpush2.msra.mxu0 %v725
        %805 = vmatprep.subr.mxu0 0.0
        %806 = vmatpush2.msra.mxu0 %v724
        %807 = vmatprep.subr.mxu0 0.0
        %808 = vmatpush2.msra.mxu0 %v723
        %809 = vmatprep.subr.mxu0 0.0
        %810 = vmatpush2.msra.mxu0 %v722
        %811 = vmatprep.subr.mxu0 0.0
        %812 = vmatpush2.msra.mxu0 %v721
        %813 = vmatprep.subr.mxu0 0.0
        %814 = vmatpush2.msra.mxu0 %v720
        %815 = vmatprep.mubr.f32.mxu0 %v537
        %816 = vmatmul.mubr.f32.gmra.mxu0 %v536
        %v817 = vpop.f32.mrf.mxu0
        %v818 = vadd.f32 0.0, %v817
        %v819 = vpop.f32.mrf.mxu0
        %820 = vmatprep.mubr.f32.mxu0 %v540
        %821 = vmatmul.mubr.f32.gmra.mxu0 %v539
        %v822 = vpop.f32.mrf.mxu0
        %v823 = vadd.f32 0.0, %v822
        %v824 = vpop.f32.mrf.mxu0
        %825 = vdwg.mxu0
        %826 = vmatprep.subr.mxu0 0.0
        %827 = vmatpush1.msra.mxu0 0.0
        %828 = vmatprep.subr.mxu0 0.0
        %829 = vmatpush1.msra.mxu0 0.0
        %830 = vmatprep.subr.mxu0 0.0
        %831 = vmatpush1.msra.mxu0 0.0
        %832 = vmatprep.subr.mxu0 0.0
        %833 = vmatpush1.msra.mxu0 0.0
        %834 = vmatprep.subr.mxu0 0.0
        %835 = vmatpush1.msra.mxu0 0.0
        %836 = vmatprep.subr.mxu0 0.0
        %837 = vmatpush1.msra.mxu0 0.0
        %838 = vmatprep.subr.mxu0 0.0
        %839 = vmatpush1.msra.mxu0 0.0
        %840 = vmatprep.subr.mxu0 0.0
        %841 = vmatpush1.msra.mxu0 0.0
        %842 = vmatprep.subr.mxu0 0.0
        %843 = vmatpush1.msra.mxu0 %v743
        %844 = vmatprep.subr.mxu0 0.0
        %845 = vmatpush1.msra.mxu0 %v742
        %846 = vmatprep.subr.mxu0 0.0
        %847 = vmatpush1.msra.mxu0 %v741
        %848 = vmatprep.subr.mxu0 0.0
        %849 = vmatpush1.msra.mxu0 %v740
        %850 = vmatprep.subr.mxu0 0.0
        %851 = vmatpush1.msra.mxu0 %v739
        %852 = vmatprep.subr.mxu0 0.0
        %853 = vmatpush1.msra.mxu0 %v738
        %854 = vmatprep.subr.mxu0 0.0
        %855 = vmatpush1.msra.mxu0 %v737
        %856 = vmatprep.subr.mxu0 0.0
        %857 = vmatpush1.msra.mxu0 %v736
        %858 = vmatprep.subr.mxu0 0.0
        %859 = vmatpush2.msra.mxu0 0.0
        %860 = vmatprep.subr.mxu0 0.0
        %861 = vmatpush2.msra.mxu0 0.0
        %862 = vmatprep.subr.mxu0 0.0
        %863 = vmatpush2.msra.mxu0 0.0
        %864 = vmatprep.subr.mxu0 0.0
        %865 = vmatpush2.msra.mxu0 0.0
        %866 = vmatprep.subr.mxu0 0.0
        %867 = vmatpush2.msra.mxu0 0.0
        %868 = vmatprep.subr.mxu0 0.0
        %869 = vmatpush2.msra.mxu0 0.0
        %870 = vmatprep.subr.mxu0 0.0
        %871 = vmatpush2.msra.mxu0 0.0
        %872 = vmatprep.subr.mxu0 0.0
        %873 = vmatpush2.msra.mxu0 0.0
        %874 = vmatprep.subr.mxu0 0.0
        %875 = vmatpush2.msra.mxu0 0.0
        %876 = vmatprep.subr.mxu0 0.0
        %877 = vmatpush2.msra.mxu0 0.0
        %878 = vmatprep.subr.mxu0 0.0
        %879 = vmatpush2.msra.mxu0 0.0
        %880 = vmatprep.subr.mxu0 0.0
        %881 = vmatpush2.msra.mxu0 0.0
        %882 = vmatprep.subr.mxu0 0.0
        %883 = vmatpush2.msra.mxu0 0.0
        %884 = vmatprep.subr.mxu0 0.0
        %885 = vmatpush2.msra.mxu0 0.0
        %886 = vmatprep.subr.mxu0 0.0
        %887 = vmatpush2.msra.mxu0 0.0
        %888 = vmatprep.subr.mxu0 0.0
        %889 = vmatpush2.msra.mxu0 0.0
        %890 = vmatprep.mubr.f32.mxu0 0.0
        %891 = vmatmul.mubr.f32.gmra.mxu0 %v746
        %v892 = vpop.f32.mrf.mxu0
        %v893 = vadd.f32 %v818, %v892
        %v894 = vpop.f32.mrf.mxu0
        %895 = vmatprep.mubr.f32.mxu0 0.0
        %896 = vmatmul.mubr.f32.gmra.mxu0 %v749
        %v897 = vpop.f32.mrf.mxu0
        %v898 = vadd.f32 %v823, %v897
        %v899 = vpop.f32.mrf.mxu0
        %900 = vdwg.mxu0
        %v901 = vld [vmem:[%s3] sm:$0xff]
        %v902 = vld [vmem:[%s3 + $0x8] sm:$0xff]
        %v903 = vld [vmem:[%s3 + $0x10] sm:$0xff]
        %v904 = vld [vmem:[%s3 + $0x18] sm:$0xff]
        %v905 = vld [vmem:[%s3 + $0x20] sm:$0xff]
        %v906 = vld [vmem:[%s3 + $0x28] sm:$0xff]
        %v907 = vld [vmem:[%s3 + $0x30] sm:$0xff]
        %v908 = vld [vmem:[%s3 + $0x38] sm:$0xff]
        %v910 = vsel %vm543, %v901, 0
        %v913 = vsel %vm543, %v902, 0
        %v916 = vsel %vm543, %v903, 0
        %v919 = vsel %vm543, %v904, 0
        %v922 = vsel %vm543, %v905, 0
        %v925 = vsel %vm543, %v906, 0
        %v928 = vsel %vm543, %v907, 0
        %v931 = vsel %vm543, %v908, 0
        %933 = vmatprep.subr.mxu0 0.0
        %934 = vmatpush1.msra.mxu0 0.0
        %935 = vmatprep.subr.mxu0 0.0
        %936 = vmatpush1.msra.mxu0 0.0
        %937 = vmatprep.subr.mxu0 0.0
        %938 = vmatpush1.msra.mxu0 0.0
        %939 = vmatprep.subr.mxu0 0.0
        %940 = vmatpush1.msra.mxu0 0.0
        %941 = vmatprep.subr.mxu0 0.0
        %942 = vmatpush1.msra.mxu0 0.0
        %943 = vmatprep.subr.mxu0 0.0
        %944 = vmatpush1.msra.mxu0 0.0
        %945 = vmatprep.subr.mxu0 0.0
        %946 = vmatpush1.msra.mxu0 0.0
        %947 = vmatprep.subr.mxu0 0.0
        %948 = vmatpush1.msra.mxu0 0.0
        %949 = vmatprep.subr.mxu0 0.0
        %950 = vmatpush1.msra.mxu0 0.0
        %951 = vmatprep.subr.mxu0 0.0
        %952 = vmatpush1.msra.mxu0 0.0
        %953 = vmatprep.subr.mxu0 0.0
        %954 = vmatpush1.msra.mxu0 0.0
        %955 = vmatprep.subr.mxu0 0.0
        %956 = vmatpush1.msra.mxu0 0.0
        %957 = vmatprep.subr.mxu0 0.0
        %958 = vmatpush1.msra.mxu0 0.0
        %959 = vmatprep.subr.mxu0 0.0
        %960 = vmatpush1.msra.mxu0 0.0
        %961 = vmatprep.subr.mxu0 0.0
        %962 = vmatpush1.msra.mxu0 %v898
        %963 = vmatprep.subr.mxu0 0.0
        %964 = vmatpush1.msra.mxu0 %v893
        %965 = vmatprep.subr.mxu0 0.0
        %966 = vmatpush2.msra.mxu0 0.0
        %967 = vmatprep.subr.mxu0 0.0
        %968 = vmatpush2.msra.mxu0 0.0
        %969 = vmatprep.subr.mxu0 0.0
        %970 = vmatpush2.msra.mxu0 0.0
        %971 = vmatprep.subr.mxu0 0.0
        %972 = vmatpush2.msra.mxu0 0.0
        %973 = vmatprep.subr.mxu0 0.0
        %974 = vmatpush2.msra.mxu0 0.0
        %975 = vmatprep.subr.mxu0 0.0
        %976 = vmatpush2.msra.mxu0 0.0
        %977 = vmatprep.subr.mxu0 0.0
        %978 = vmatpush2.msra.mxu0 0.0
        %979 = vmatprep.subr.mxu0 0.0
        %980 = vmatpush2.msra.mxu0 0.0
        %981 = vmatprep.subr.mxu0 0.0
        %982 = vmatpush2.msra.mxu0 0.0
        %983 = vmatprep.subr.mxu0 0.0
        %984 = vmatpush2.msra.mxu0 0.0
        %985 = vmatprep.subr.mxu0 0.0
        %986 = vmatpush2.msra.mxu0 0.0
        %987 = vmatprep.subr.mxu0 0.0
        %988 = vmatpush2.msra.mxu0 0.0
        %989 = vmatprep.subr.mxu0 0.0
        %990 = vmatpush2.msra.mxu0 0.0
        %991 = vmatprep.subr.mxu0 0.0
        %992 = vmatpush2.msra.mxu0 0.0
        %993 = vmatprep.subr.mxu0 0.0
        %994 = vmatpush2.msra.mxu0 0.0
        %995 = vmatprep.subr.mxu0 0.0
        %996 = vmatpush2.msra.mxu0 0.0
        %997 = vmatprep.mubr.f32.mxu0 0.0
        %998 = vmatmul.mubr.f32.gmra.mxu0 %v910
        %v999 = vpop.f32.mrf.mxu0
        %v1000 = vadd.f32 0.0, %v999
        %v1001 = vpop.f32.mrf.mxu0
        %1002 = vmatprep.mubr.f32.mxu0 0.0
        %1003 = vmatmul.mubr.f32.gmra.mxu0 %v913
        %v1004 = vpop.f32.mrf.mxu0
        %v1005 = vadd.f32 0.0, %v1004
        %v1006 = vpop.f32.mrf.mxu0
        %1007 = vmatprep.mubr.f32.mxu0 0.0
        %1008 = vmatmul.mubr.f32.gmra.mxu0 %v916
        %v1009 = vpop.f32.mrf.mxu0
        %v1010 = vadd.f32 0.0, %v1009
        %v1011 = vpop.f32.mrf.mxu0
        %1012 = vmatprep.mubr.f32.mxu0 0.0
        %1013 = vmatmul.mubr.f32.gmra.mxu0 %v919
        %v1014 = vpop.f32.mrf.mxu0
        %v1015 = vadd.f32 0.0, %v1014
        %v1016 = vpop.f32.mrf.mxu0
        %1017 = vmatprep.mubr.f32.mxu0 0.0
        %1018 = vmatmul.mubr.f32.gmra.mxu0 %v922
        %v1019 = vpop.f32.mrf.mxu0
        %v1020 = vadd.f32 0.0, %v1019
        %v1021 = vpop.f32.mrf.mxu0
        %1022 = vmatprep.mubr.f32.mxu0 0.0
        %1023 = vmatmul.mubr.f32.gmra.mxu0 %v925
        %v1024 = vpop.f32.mrf.mxu0
        %v1025 = vadd.f32 0.0, %v1024
        %v1026 = vpop.f32.mrf.mxu0
        %1027 = vmatprep.mubr.f32.mxu0 0.0
        %1028 = vmatmul.mubr.f32.gmra.mxu0 %v928
        %v1029 = vpop.f32.mrf.mxu0
        %v1030 = vadd.f32 0.0, %v1029
        %v1031 = vpop.f32.mrf.mxu0
        %1032 = vmatprep.mubr.f32.mxu0 0.0
        %1033 = vmatmul.mubr.f32.gmra.mxu0 %v931
        %v1034 = vpop.f32.mrf.mxu0
        %v1035 = vadd.f32 0.0, %v1034
        %v1036 = vpop.f32.mrf.mxu0
        %1037 = vdwg.mxu0
        %vm1038 = vcmask 23552
        %1039 = vst.msk [vmem:[%s299] sm:$0xff] %vm1038, %v1000
        %1040 = vst.msk [vmem:[%s299 + $0x8] sm:$0xff] %vm1038, %v1005
        %1041 = vst.msk [vmem:[%s299 + $0x10] sm:$0xff] %vm1038, %v1010
        %1042 = vst.msk [vmem:[%s299 + $0x18] sm:$0xff] %vm1038, %v1015
        %1043 = vst.msk [vmem:[%s299 + $0x20] sm:$0xff] %vm1038, %v1020
        %1044 = vst.msk [vmem:[%s299 + $0x28] sm:$0xff] %vm1038, %v1025
        %1045 = vst.msk [vmem:[%s299 + $0x30] sm:$0xff] %vm1038, %v1030
        %1046 = vst.msk [vmem:[%s299 + $0x38] sm:$0xff] %vm1038, %v1035
        %s1047 = sand.u32 %s143, 1
        %s1048 = scalar_lea.sflag [#allocation3], %s1047
        %s1049 = sand.u32 %s143, 1
        %s1050 = smul.addr %s1049, 12
        %s1051 = scalar_lea.vmem [#allocation2], %s1050
        %s1052 = sand.u32 %s169, 1
        %s1053 = scalar_lea.sflag [#allocation5], %s1052
        %s1054 = sand.u32 %s169, 1
        %s1055 = smul.addr %s1054, 12
        %s1056 = scalar_lea.vmem [#allocation4], %s1055
        %p1057 = scmp.lt.s32.totalorder %s25, 1
        %s1058 = scalar_select %p1057, %s25, 1
        %s1059 = smul.addr %s1058, 8
        %s1060 = smul.addr %s1059, 8
        %s1061 = scalar_lea.vmem %s7, %s1060
        // Predicated region
        $region41: #{tpu_custom_call.1} parent=39 // pred_check
          %p1062 = pneg %p153
        $region42: #{tpu_custom_call.1} parent=39 // pred_check_branch
          %1064 = sbr.rel (%p1062) target = $region44
        $region43: #{tpu_custom_call.1} parent=39 // pred_region
          %s1066 = ssub.s32 192, 192
          %1067 = vsyncadd %s1048, %s1066
          %s1068 = smul.addr %s25, 3
          %s1069 = smul.addr %s1068, 64
          %s1070 = scalar_lea.hbm %s5, %s1069
          %s1072 = sshll.u32 %s1051, 4
          %s1073 = int_to_ptr.vmem [resolvable:$true] %s1072
          %1075 = dma.vmem_to_hbm [thread:$0]  %s1073, 192, %s1070, %s1048
        $region44: #{tpu_custom_call.1} parent=39 // pred_fallthru
          _
        // Predicated region
        $region45: #{tpu_custom_call.1} parent=39 // pred_check
          %p1076 = pneg %p179
        $region46: #{tpu_custom_call.1} parent=39 // pred_check_branch
          %1078 = sbr.rel (%p1076) target = $region48
        $region47: #{tpu_custom_call.1} parent=39 // pred_region
          %s1080 = ssub.s32 192, 192
          %1081 = vsyncadd %s1053, %s1080
          %s1082 = smul.addr %s25, 3
          %s1083 = smul.addr %s1082, 64
          %s1084 = scalar_lea.hbm %s6, %s1083
          %s1086 = sshll.u32 %s1056, 4
          %s1087 = int_to_ptr.vmem [resolvable:$true] %s1086
          %1089 = dma.vmem_to_hbm [thread:$0]  %s1087, 192, %s1084, %s1053
        $region48: #{tpu_custom_call.1} parent=39 // pred_fallthru
          _
        // Predicated region
        $region49: #{tpu_custom_call.1} parent=39 // pred_check
          %p1090 = pneg %p205
        $region50: #{tpu_custom_call.1} parent=39 // pred_check_branch
          %1092 = sbr.rel (%p1090) target = $region52
        $region51: #{tpu_custom_call.1} parent=39 // pred_region
          _
        $region52: #{tpu_custom_call.1} parent=39 // pred_fallthru
          _
      $region40: #{tpu_custom_call.1} parent=5 // pred_fallthru
        _
      %p1093 = scmp.le.s32.totalorder 2, %s20
      // Predicated region
      $region53: #{tpu_custom_call.1} parent=5 // pred_check
        %p1094 = pneg %p1093
      $region54: #{tpu_custom_call.1} parent=5 // pred_check_branch
        %1096 = sbr.rel (%p1094) target = $region56
      $region55: #{tpu_custom_call.1} parent=5 // pred_region
        %s1097 = ssub.s32 %s20, 2
        // Predicated region
        $region57: #{tpu_custom_call.1} parent=55 // pred_check
          %p1098 = pneg %p159
        $region58: #{tpu_custom_call.1} parent=55 // pred_check_branch
          %1100 = sbr.rel (%p1098) target = $region60
        $region59: #{tpu_custom_call.1} parent=55 // pred_region
          %s1101 = sand.u32 %s144, 1
          %s1102 = scalar_lea.sflag [#allocation3], %s1101
          %s1103 = sand.u32 %s144, 1
          %s1104 = smul.addr %s1103, 12
          %s1105 = scalar_lea.vmem [#allocation2], %s1104
          %1106 = dma.done %s1102, 192
        $region60: #{tpu_custom_call.1} parent=55 // pred_fallthru
          _
        // Predicated region
        $region61: #{tpu_custom_call.1} parent=55 // pred_check
          %p1107 = pneg %p185
        $region62: #{tpu_custom_call.1} parent=55 // pred_check_branch
          %1109 = sbr.rel (%p1107) target = $region64
        $region63: #{tpu_custom_call.1} parent=55 // pred_region
          %s1110 = sand.u32 %s170, 1
          %s1111 = scalar_lea.sflag [#allocation5], %s1110
          %s1112 = sand.u32 %s170, 1
          %s1113 = smul.addr %s1112, 12
          %s1114 = scalar_lea.vmem [#allocation4], %s1113
          %1115 = dma.done %s1111, 192
        $region64: #{tpu_custom_call.1} parent=55 // pred_fallthru
          _
        // Predicated region
        $region65: #{tpu_custom_call.1} parent=55 // pred_check
          %p1116 = pneg %p211
        $region66: #{tpu_custom_call.1} parent=55 // pred_check_branch
          %1118 = sbr.rel (%p1116) target = $region68
        $region67: #{tpu_custom_call.1} parent=55 // pred_region
          %p1119 = scmp.lt.s32.totalorder %s26, 1
          %s1120 = scalar_select %p1119, %s26, 1
          %s1121 = smul.addr %s1120, 8
          %s1122 = smul.addr %s1121, 8
          %s1123 = scalar_lea.vmem %s7, %s1122
        $region68: #{tpu_custom_call.1} parent=55 // pred_fallthru
          _
      $region56: #{tpu_custom_call.1} parent=5 // pred_fallthru
        _
    $region6: #{tpu_custom_call.1} parent=1 // loop_footer
      %s24 = sadd.s32 1, %s20
    $region7: #{tpu_custom_call.1} parent=1 // loop_footer_branch
      %19 = sbr.rel target = $region3
    $region8: #{tpu_custom_call.1} parent=1 // loop_exit
      _
    %1124 = vsyncpa [#allocation3], 1
    %s1125 = scalar_lea.sflag [#allocation3], 1
    %1126 = vsyncpa %s1125, 1
    %1127 = vsyncpa [#allocation5], 1
    %s1128 = scalar_lea.sflag [#allocation5], 1
    %1129 = vsyncpa %s1128, 1

</llo_original>
